<compile_context>
chip_gen: v7x
topology: tpu7x:2x2x1
jax: 0.10.0
libtpu: 0.0.40
codegen_flags: <defaults>
</compile_context>

<pallas_src>
import jax
import jax.numpy as jnp
from jax.experimental import pallas as pl
from jax.experimental.pallas import tpu as pltpu


def _round_up(x, m):
    return (x + m - 1) // m * m


# ---------------------------------------------------------------------------
# Pallas kernel: fused (bf16) matmul + bias + ReLU  (one conv layer, im2col)
# ---------------------------------------------------------------------------
def _matmul_bias_relu_kernel(x_ref, w_ref, b_ref, o_ref):
    # x_ref: (TM, Kp) bf16 im2col patch tile (streamed over the M grid)
    # w_ref: (Kp, Np) bf16 flattened conv weights (resident across the grid)
    # b_ref: (1, Np)  f32 bias (resident)
    acc = jnp.dot(x_ref[...], w_ref[...], preferred_element_type=jnp.float32)
    acc = acc + b_ref[...]
    o_ref[...] = jnp.maximum(acc, 0.0).astype(o_ref.dtype)


def matmul_bias_relu(x, w, b, *, tm=256):
    """ReLU((M, K) @ (K, N) + (1, N)) — M-tiled Pallas call, bf16 MXU inputs."""
    M, K = x.shape
    K2, N = w.shape
    assert K == K2 and b.shape == (1, N)

    # bf16 operands hit the native MXU path; accumulation stays f32 in-kernel.
    x = x.astype(jnp.bfloat16)
    w = w.astype(jnp.bfloat16)
    b = b.astype(jnp.float32)

    # Pad K and N to multiples of 128 -> lane-aligned loads and unmasked,
    # lane-dense output stores.  Zero padding changes nothing numerically.
    k_pad = _round_up(K, 128)
    n_pad = _round_up(N, 128)
    if k_pad != K:
        x = jnp.pad(x, ((0, 0), (0, k_pad - K)))
        w = jnp.pad(w, ((0, k_pad - K), (0, 0)))
    if n_pad != N:
        w = jnp.pad(w, ((0, 0), (0, n_pad - N)))
        b = jnp.pad(b, ((0, 0), (0, n_pad - N)))

    # Tile over M; for small problems fall back to a single full-size tile.
    tm = min(tm, _round_up(M, 8))
    m_pad = _round_up(M, tm)
    if m_pad != M:
        x = jnp.pad(x, ((0, m_pad - M), (0, 0)))
    grid = (m_pad // tm,)

    cost = pl.CostEstimate(
        flops=2 * m_pad * k_pad * n_pad,
        transcendentals=0,
        bytes_accessed=(m_pad * k_pad * 2 + k_pad * n_pad * 2
                        + n_pad * 4 + m_pad * n_pad * 4),
    )

    out = pl.pallas_call(
        _matmul_bias_relu_kernel,
        out_shape=jax.ShapeDtypeStruct((m_pad, n_pad), jnp.float32),
        grid=grid,
        in_specs=[
            pl.BlockSpec((tm, k_pad), lambda i: (i, 0)),    # streamed patches
            pl.BlockSpec((k_pad, n_pad), lambda i: (0, 0)),  # resident weights
            pl.BlockSpec((1, n_pad), lambda i: (0, 0)),      # resident bias
        ],
        out_specs=pl.BlockSpec((tm, n_pad), lambda i: (i, 0)),
        compiler_params=pltpu.CompilerParams(
            # Independent M tiles: lets v7x shard them across its 2 TCs.
            dimension_semantics=("parallel",),
        ),
        cost_estimate=cost,
    )(x, w, b)
    return out[:M, :N]


# ---------------------------------------------------------------------------
# Conv layer = NHWC im2col (plain-JAX glue) + Pallas matmul/bias/ReLU kernel
# ---------------------------------------------------------------------------
def conv2d_relu_nhwc(x, w, b, stride, *, tm=256):
    """x: (N, H, W, C) f32, w: (OC, IC, KH, KW) PyTorch layout, b: (OC,).

    Valid conv + ReLU, NHWC in / NHWC out.  Channels stay contiguous (lane
    axis) through the whole layer; the hot matmul runs inside Pallas.
    """
    # TODO(synk): pull the im2col patch extraction inside the Pallas kernel
    # (strided reads from a VMEM-resident input tile) so conv1's 8x8/stride-4
    # patches don't inflate HBM traffic; and fuse the tiny conv2/conv3 layers
    # into a single pallas_call to drop two HBM round-trips.
    N, H, W, C = x.shape
    OC, IC, KH, KW = w.shape
    assert IC == C
    OH = (H - KH) // stride + 1
    OW = (W - KW) // stride + 1

    cols = []
    for i in range(KH):
        for j in range(KW):
            cols.append(
                x[:, i:i + stride * OH:stride, j:j + stride * OW:stride, :]
            )  # (N, OH, OW, C)
    col = jnp.concatenate(cols, axis=-1)           # K order: (kh, kw, c)
    col = col.reshape(N * OH * OW, KH * KW * C)

    # Flatten weights in the matching (kh, kw, c) order.
    wmat = w.transpose(0, 2, 3, 1).reshape(OC, KH * KW * C).T      # (K, OC)
    out = matmul_bias_relu(col, wmat, b.reshape(1, OC), tm=tm)     # (M, OC)
    return out.reshape(N, OH, OW, OC)


# ---------------------------------------------------------------------------
# DQN forward (matches the PyTorch module semantics)
# ---------------------------------------------------------------------------
def dqn_forward(x, params, c, h, w):
    # PyTorch: x.reshape(-1, c, w, h) — note the w/h swap in the reference
    # forward; reproduce it exactly (h == w in practice for pistonball).
    x = x.astype(jnp.float32).reshape(-1, c, w, h)
    x = x.transpose(0, 2, 3, 1)                    # NCHW -> NHWC once at entry
    x = conv2d_relu_nhwc(x, params["w1"], params["b1"], stride=4)
    x = conv2d_relu_nhwc(x, params["w2"], params["b2"], stride=2)
    x = conv2d_relu_nhwc(x, params["w3"], params["b3"], stride=1)
    n = x.shape[0]
    # nn.Flatten flattens in NCHW order; transpose back only at the very end.
    return x.transpose(0, 3, 1, 2).reshape(n, -1)


# ---------------------------------------------------------------------------
# Pure-JAX reference (f32) for a correctness check of the bf16 kernel path
# ---------------------------------------------------------------------------
def _ref_forward(x, params, c, h, w):
    x = x.astype(jnp.float32).reshape(-1, c, w, h)

    def conv(x, wgt, b, s):
        y = jax.lax.conv_general_dilated(
            x, wgt, window_strides=(s, s), padding="VALID",
            dimension_numbers=("NCHW", "OIHW", "NCHW"),
            precision=jax.lax.Precision.HIGHEST)
        return jax.nn.relu(y + b.reshape(1, -1, 1, 1))

    x = conv(x, params["w1"], params["b1"], 4)
    x = conv(x, params["w2"], params["b2"], 2)
    x = conv(x, params["w3"], params["b3"], 1)
    return x.reshape(x.shape[0], -1)


# ---------------------------------------------------------------------------
# Deterministic parameter init (PyTorch conv default: U(-1/sqrt(fan_in), ...))
# ---------------------------------------------------------------------------
def init_params(key, c):
    def conv_init(k, oc, ic, kh, kw):
        k1, k2 = jax.random.split(k)
        fan_in = ic * kh * kw
        bound = 1.0 / (fan_in ** 0.5)
        w = jax.random.uniform(k1, (oc, ic, kh, kw), jnp.float32, -bound, bound)
        b = jax.random.uniform(k2, (oc,), jnp.float32, -bound, bound)
        return w, b

    k1, k2, k3 = jax.random.split(key, 3)
    w1, b1 = conv_init(k1, 32, c, 8, 8)
    w2, b2 = conv_init(k2, 64, 32, 4, 4)
    w3, b3 = conv_init(k3, 64, 64, 3, 3)
    return dict(w1=w1, b1=b1, w2=w2, b2=b2, w3=w3, b3=b3)


if __name__ == "__main__":
    # Small-but-valid shapes: the conv stack (k8/s4 -> k4/s2 -> k3/s1) needs
    # spatial >= 36; use 44 so the flattened output is non-degenerate.
    BATCH, C, H, W = 2, 4, 44, 44

    key = jax.random.PRNGKey(0)
    k_params, k_x = jax.random.split(key)
    params = init_params(k_params, C)
    x = jax.random.normal(k_x, (BATCH, C, H, W), jnp.float32)

    out = dqn_forward(x, params, C, H, W)
    out = jax.block_until_ready(out)

    # Expected flatten dim: 44 -> 10 -> 4 -> 2 spatial, 64 channels => 256.
    assert out.shape == (BATCH, 64 * 2 * 2), out.shape
    assert bool(jnp.all(jnp.isfinite(out)))

    # Validate the bf16 MXU path against the f32 reference (lenient tol).
    ref = jax.block_until_ready(_ref_forward(x, params, C, H, W))
    err = float(jnp.max(jnp.abs(out - ref)) / (jnp.max(jnp.abs(ref)) + 1e-6))
    assert err < 5e-2, f"normalized max error too large: {err}"

    print("KERNEL_OK")
</pallas_src>

<mosaic_0001>
module attributes {stable_mosaic.version = 11 : i64} {
  func.func @_matmul_bias_relu_kernel(%arg0: i32, %arg1: memref<200x256xbf16, #tpu.memory_space<vmem>>, %arg2: memref<256x128xbf16, #tpu.memory_space<vmem>>, %arg3: memref<1x128xf32, #tpu.memory_space<vmem>>, %arg4: memref<200x128xf32, #tpu.memory_space<vmem>>) attributes {dimension_semantics = [#tpu.dimension_semantics<parallel>], iteration_bounds = array<i64: 1>, scalar_prefetch = 0 : i64, scratch_operands = 0 : i64, tpu.core_type = #tpu.core_type<tc>, window_params = [{transform_indices = @transform_0, window_bounds = array<i64: 200, 256>}, {pipeline_mode = #tpu.pipeline_mode<synchronous>, transform_indices = @transform_1, window_bounds = array<i64: 256, 128>}, {pipeline_mode = #tpu.pipeline_mode<synchronous>, transform_indices = @transform_2, window_bounds = array<i64: 1, 128>}, {transform_indices = @transform_3, window_bounds = array<i64: 200, 128>}]} {
    %c0 = arith.constant 0 : index
    %c0_0 = arith.constant 0 : index
    %0 = vector.load %arg1[%c0, %c0_0] : memref<200x256xbf16, #tpu.memory_space<vmem>>, vector<200x256xbf16>
    %c0_1 = arith.constant 0 : index
    %c0_2 = arith.constant 0 : index
    %1 = vector.load %arg2[%c0_1, %c0_2] : memref<256x128xbf16, #tpu.memory_space<vmem>>, vector<256x128xbf16>
    %cst = arith.constant dense<0.000000e+00> : vector<200x128xf32>
    %2 = tpu.matmul %0, %1, %cst {dimension_numbers = #tpu.dot_dimension_numbers<[1], [0], [0], [1], [0, 0, 1, 1], [], []>} : vector<200x256xbf16>, vector<256x128xbf16>, vector<200x128xf32> -> vector<200x128xf32>
    %c0_3 = arith.constant 0 : index
    %c0_4 = arith.constant 0 : index
    %3 = vector.load %arg3[%c0_3, %c0_4] : memref<1x128xf32, #tpu.memory_space<vmem>>, vector<1x128xf32>
    %4 = vector.broadcast %3 : vector<1x128xf32> to vector<200x128xf32>
    %5 = arith.addf %2, %4 : vector<200x128xf32>
    %cst_5 = arith.constant 0.000000e+00 : f32
    %6 = vector.broadcast %cst_5 : f32 to vector<200x128xf32>
    %7 = arith.maximumf %5, %6 : vector<200x128xf32>
    %c0_6 = arith.constant 0 : index
    %c0_7 = arith.constant 0 : index
    %8 = vector.load %arg4[%c0_6, %c0_7] : memref<200x128xf32, #tpu.memory_space<vmem>>, vector<200x128xf32>
    tpu.vector_store %arg4[%c0_6, %c0_7], %7 {strides = array<i32>} : memref<200x128xf32, #tpu.memory_space<vmem>>, vector<200x128xf32>,
    return
  }
  func.func @transform_0(%arg0: i32) -> (i32, i32) {
    %c0_i32 = arith.constant 0 : i32
    %c0_i32_0 = arith.constant 0 : i32
    return %arg0, %c0_i32 : i32, i32
  }
  func.func @transform_1(%arg0: i32) -> (i32, i32) {
    %c0_i32 = arith.constant 0 : i32
    %c0_i32_0 = arith.constant 0 : i32
    %c0_i32_1 = arith.constant 0 : i32
    return %c0_i32, %c0_i32_0 : i32, i32
  }
  func.func @transform_2(%arg0: i32) -> (i32, i32) {
    %c0_i32 = arith.constant 0 : i32
    %c0_i32_0 = arith.constant 0 : i32
    %c0_i32_1 = arith.constant 0 : i32
    return %c0_i32, %c0_i32_0 : i32, i32
  }
  func.func @transform_3(%arg0: i32) -> (i32, i32) {
    %c0_i32 = arith.constant 0 : i32
    %c0_i32_0 = arith.constant 0 : i32
    return %arg0, %c0_i32 : i32, i32
  }
}

</mosaic_0001>

<llo_original>
// kernel: tpu_custom_call.1
$region0: #{tpu_custom_call.1}
  #allocation0 [shape = 'u32[]', space=smem, size = 0x4, offset = 0x4, fixed_abs, tag = 'smem constant byte address 0x4 - core index']
  #allocation1 [shape = 'u32[144,128]{1,0:T(1,128)}', space=vmem, size = 0x12000, scoped, tag = 'internal scratch']
  %s0 = inlined_call_operand.hbm [shape: bf16[200,256], index: 0, kind: input, shape index: {}]
  %s1 = inlined_call_operand.hbm [shape: bf16[256,128], index: 1, kind: input, shape index: {}]
  %s2 = inlined_call_operand.vmem [shape: f32[1,128], index: 2, kind: input, shape index: {}]
  %s3 = inlined_call_operand.hbm [shape: f32[200,128], index: 3, kind: output, shape index: {}]
  %s4 = sld [smem:[#allocation0]]
  $region30: #{tpu_custom_call.1} parent=0
    _
  %s6 = ssub.s32 1, %s4
  %s7 = scalar_select 0, %s6, %s4
  $region1: #{tpu_custom_call.1} parent=0
    #allocation2 [shape = 'u8[102400]{0}', space=vmem, size = 0x19000, scoped, tag = 'input window, operand 0, single buffered']
    #allocation3 [shape = 's32[1]{0}', space=sflag, size = 0x4, scoped, tag = 'scoped memory for tpu_custom_call.1']
    #allocation4 [shape = 's32[1]{0}', space=sflag, size = 0x4, scoped, tag = 'scoped memory for tpu_custom_call.1']
    #allocation5 [shape = 'u8[65536]{0}', space=vmem, size = 0x10000, scoped, tag = 'input window, operand 1, single buffered']
    #allocation6 [shape = 's32[1]{0}', space=sflag, size = 0x4, scoped, tag = 'scoped memory for tpu_custom_call.1']
    #allocation7 [shape = 'u8[102400]{0}', space=vmem, size = 0x19000, scoped, tag = 'output window, operand 0, single buffered']
    %8 = vsyncpa [#allocation3], 0
    %9 = vsyncpa [#allocation6], 0
    %10 = vsyncpa [#allocation4], 0
    // Predicated region
    $region2: #{tpu_custom_call.1} parent=1 // pred_check
      _
    $region3: #{tpu_custom_call.1} parent=1 // pred_check_branch
      %12 = sbr.rel (0) target = $region5
    $region4: #{tpu_custom_call.1} parent=1 // pred_region
      %s14 = ssub.s32 3200, 3200
      %15 = vsyncadd [#allocation3], %s14
      %s16 = sshll.u32 [#allocation2], 4
      %s17 = int_to_ptr.vmem [resolvable:$true] %s16
      %22 = dma.hbm_to_vmem [thread:$0]  %s0, 3200, %s17, [#allocation3], 128, 128, 8
    $region5: #{tpu_custom_call.1} parent=1 // pred_fallthru
      _
    // Predicated region
    $region6: #{tpu_custom_call.1} parent=1 // pred_check
      _
    $region7: #{tpu_custom_call.1} parent=1 // pred_check_branch
      %24 = sbr.rel (0) target = $region9
    $region8: #{tpu_custom_call.1} parent=1 // pred_region
      %s26 = ssub.s32 2048, 2048
      %27 = vsyncadd [#allocation6], %s26
      %s28 = sshll.u32 [#allocation5], 4
      %s29 = int_to_ptr.vmem [resolvable:$true] %s28
      %34 = dma.hbm_to_vmem [thread:$0]  %s1, 2048, %s29, [#allocation6], 64, 64, 4
    $region9: #{tpu_custom_call.1} parent=1 // pred_fallthru
      _
    // Predicated region
    $region10: #{tpu_custom_call.1} parent=1 // pred_check
      _
    $region11: #{tpu_custom_call.1} parent=1 // pred_check_branch
      %36 = sbr.rel (0) target = $region13
    $region12: #{tpu_custom_call.1} parent=1 // pred_region
      _
    $region13: #{tpu_custom_call.1} parent=1 // pred_fallthru
      _
    // Predicated region
    $region14: #{tpu_custom_call.1} parent=1 // pred_check
      _
    $region15: #{tpu_custom_call.1} parent=1 // pred_check_branch
      %38 = sbr.rel (0) target = $region17
    $region16: #{tpu_custom_call.1} parent=1 // pred_region
      %39 = dma.done [#allocation3], 3200
    $region17: #{tpu_custom_call.1} parent=1 // pred_fallthru
      _
    // Predicated region
    $region18: #{tpu_custom_call.1} parent=1 // pred_check
      _
    $region19: #{tpu_custom_call.1} parent=1 // pred_check_branch
      %41 = sbr.rel (0) target = $region21
    $region20: #{tpu_custom_call.1} parent=1 // pred_region
      %42 = dma.done [#allocation6], 2048
    $region21: #{tpu_custom_call.1} parent=1 // pred_fallthru
      _
    %v44 = vld [vmem:[#allocation2] sm:$0xff]
    %v45 = vld [vmem:[#allocation2 + $0x8] sm:$0xff]
    %v46 = vld [vmem:[#allocation2 + $0x10] sm:$0xff]
    %v47 = vld [vmem:[#allocation2 + $0x18] sm:$0xff]
    %v48 = vld [vmem:[#allocation2 + $0x20] sm:$0xff]
    %v49 = vld [vmem:[#allocation2 + $0x28] sm:$0xff]
    %v50 = vld [vmem:[#allocation2 + $0x30] sm:$0xff]
    %v51 = vld [vmem:[#allocation2 + $0x38] sm:$0xff]
    %v52 = vld [vmem:[#allocation2 + $0x40] sm:$0xff]
    %v53 = vld [vmem:[#allocation2 + $0x48] sm:$0xff]
    %v54 = vld [vmem:[#allocation2 + $0x50] sm:$0xff]
    %v55 = vld [vmem:[#allocation2 + $0x58] sm:$0xff]
    %v56 = vld [vmem:[#allocation2 + $0x60] sm:$0xff]
    %v57 = vld [vmem:[#allocation2 + $0x68] sm:$0xff]
    %v58 = vld [vmem:[#allocation2 + $0x70] sm:$0xff]
    %v59 = vld [vmem:[#allocation2 + $0x78] sm:$0xff]
    %v60 = vld [vmem:[#allocation2 + $0x80] sm:$0xff]
    %v61 = vld [vmem:[#allocation2 + $0x88] sm:$0xff]
    %v62 = vld [vmem:[#allocation2 + $0x90] sm:$0xff]
    %v63 = vld [vmem:[#allocation2 + $0x98] sm:$0xff]
    %v64 = vld [vmem:[#allocation2 + $0xa0] sm:$0xff]
    %v65 = vld [vmem:[#allocation2 + $0xa8] sm:$0xff]
    %v66 = vld [vmem:[#allocation2 + $0xb0] sm:$0xff]
    %v67 = vld [vmem:[#allocation2 + $0xb8] sm:$0xff]
    %v68 = vld [vmem:[#allocation2 + $0xc0] sm:$0xff]
    %v69 = vld [vmem:[#allocation5] sm:$0xf]
    %v70 = vld [vmem:[#allocation5 + $0x4] sm:$0xf]
    %v71 = vld [vmem:[#allocation5 + $0x8] sm:$0xf]
    %v72 = vld [vmem:[#allocation5 + $0xc] sm:$0xf]
    %v73 = vld [vmem:[#allocation5 + $0x10] sm:$0xf]
    %v74 = vld [vmem:[#allocation5 + $0x14] sm:$0xf]
    %v75 = vld [vmem:[#allocation5 + $0x18] sm:$0xf]
    %v76 = vld [vmem:[#allocation5 + $0x1c] sm:$0xf]
    %v77 = vld [vmem:[#allocation5 + $0x20] sm:$0xf]
    %v78 = vld [vmem:[#allocation5 + $0x24] sm:$0xf]
    %v79 = vld [vmem:[#allocation5 + $0x28] sm:$0xf]
    %v80 = vld [vmem:[#allocation5 + $0x2c] sm:$0xf]
    %v81 = vld [vmem:[#allocation5 + $0x30] sm:$0xf]
    %v82 = vld [vmem:[#allocation5 + $0x34] sm:$0xf]
    %v83 = vld [vmem:[#allocation5 + $0x38] sm:$0xf]
    %v84 = vld [vmem:[#allocation5 + $0x3c] sm:$0xf]
    %v85 = vld [vmem:[#allocation5 + $0x40] sm:$0xf]
    %v86 = vld [vmem:[#allocation5 + $0x44] sm:$0xf]
    %v87 = vld [vmem:[#allocation5 + $0x48] sm:$0xf]
    %v88 = vld [vmem:[#allocation5 + $0x4c] sm:$0xf]
    %v89 = vld [vmem:[#allocation5 + $0x50] sm:$0xf]
    %v90 = vld [vmem:[#allocation5 + $0x54] sm:$0xf]
    %v91 = vld [vmem:[#allocation5 + $0x58] sm:$0xf]
    %v92 = vld [vmem:[#allocation5 + $0x5c] sm:$0xf]
    %v93 = vld [vmem:[#allocation5 + $0x60] sm:$0xf]
    %v94 = vld [vmem:[#allocation5 + $0x64] sm:$0xf]
    %v95 = vld [vmem:[#allocation5 + $0x68] sm:$0xf]
    %v96 = vld [vmem:[#allocation5 + $0x6c] sm:$0xf]
    %v97 = vld [vmem:[#allocation5 + $0x70] sm:$0xf]
    %v98 = vld [vmem:[#allocation5 + $0x74] sm:$0xf]
    %v99 = vld [vmem:[#allocation5 + $0x78] sm:$0xf]
    %v100 = vld [vmem:[#allocation5 + $0x7c] sm:$0xf]
    %v101 = vld [vmem:[%s2] sm:$0x1]
    %v103 = vlaneseq
    %v104 = vshrl.u32 %v103, 7
    %v105 = vsub.s32 0, %v104
    %v106 = vrot.slane %v101, %v105
    %v133 = vunpack.c.l.b16 %v44
    %v134 = vunpack.c.h.b16 %v44
    %v135 = vunpack.c.l.b16 %v45
    %v136 = vunpack.c.h.b16 %v45
    %v137 = vunpack.c.l.b16 %v46
    %v138 = vunpack.c.h.b16 %v46
    %v139 = vunpack.c.l.b16 %v47
    %v140 = vunpack.c.h.b16 %v47
    %v141 = vunpack.c.l.b16 %v48
    %v142 = vunpack.c.h.b16 %v48
    %v143 = vunpack.c.l.b16 %v49
    %v144 = vunpack.c.h.b16 %v49
    %v145 = vunpack.c.l.b16 %v50
    %v146 = vunpack.c.h.b16 %v50
    %v147 = vunpack.c.l.b16 %v51
    %v148 = vunpack.c.h.b16 %v51
    %v149 = vunpack.c.l.b16 %v52
    %v150 = vunpack.c.h.b16 %v52
    %v151 = vunpack.c.l.b16 %v53
    %v152 = vunpack.c.h.b16 %v53
    %v153 = vunpack.c.l.b16 %v54
    %v154 = vunpack.c.h.b16 %v54
    %v155 = vunpack.c.l.b16 %v55
    %v156 = vunpack.c.h.b16 %v55
    %v157 = vunpack.c.l.b16 %v56
    %v158 = vunpack.c.h.b16 %v56
    %v159 = vunpack.c.l.b16 %v57
    %v160 = vunpack.c.h.b16 %v57
    %v161 = vunpack.c.l.b16 %v58
    %v162 = vunpack.c.h.b16 %v58
    %v163 = vunpack.c.l.b16 %v59
    %v164 = vunpack.c.h.b16 %v59
    %v165 = vunpack.c.l.b16 %v60
    %v166 = vunpack.c.h.b16 %v60
    %v167 = vunpack.c.l.b16 %v61
    %v168 = vunpack.c.h.b16 %v61
    %v169 = vunpack.c.l.b16 %v62
    %v170 = vunpack.c.h.b16 %v62
    %v171 = vunpack.c.l.b16 %v63
    %v172 = vunpack.c.h.b16 %v63
    %v173 = vunpack.c.l.b16 %v64
    %v174 = vunpack.c.h.b16 %v64
    %v175 = vunpack.c.l.b16 %v65
    %v176 = vunpack.c.h.b16 %v65
    %v177 = vunpack.c.l.b16 %v66
    %v178 = vunpack.c.h.b16 %v66
    %v179 = vunpack.c.l.b16 %v67
    %v180 = vunpack.c.h.b16 %v67
    %v181 = vunpack.c.l.b16 %v68
    %v182 = vunpack.c.h.b16 %v68
    %v183 = vpack.c.b16 %v135, %v133
    %v184 = vpack.c.b16 %v136, %v134
    %v185 = vpack.c.b16 %v139, %v137
    %v186 = vpack.c.b16 %v140, %v138
    %v187 = vpack.c.b16 %v143, %v141
    %v188 = vpack.c.b16 %v144, %v142
    %v189 = vpack.c.b16 %v147, %v145
    %v190 = vpack.c.b16 %v148, %v146
    %v191 = vpack.c.b16 %v151, %v149
    %v192 = vpack.c.b16 %v152, %v150
    %v193 = vpack.c.b16 %v155, %v153
    %v194 = vpack.c.b16 %v156, %v154
    %v195 = vpack.c.b16 %v159, %v157
    %v196 = vpack.c.b16 %v160, %v158
    %v197 = vpack.c.b16 %v163, %v161
    %v198 = vpack.c.b16 %v164, %v162
    %v199 = vpack.c.b16 %v167, %v165
    %v200 = vpack.c.b16 %v168, %v166
    %v201 = vpack.c.b16 %v171, %v169
    %v202 = vpack.c.b16 %v172, %v170
    %v203 = vpack.c.b16 %v175, %v173
    %v204 = vpack.c.b16 %v176, %v174
    %v205 = vpack.c.b16 %v179, %v177
    %v206 = vpack.c.b16 %v180, %v178
    %v207 = vpack.c.b16 %v181, %v181
    %v208 = vpack.c.b16 %v182, %v182
    %v267 = vunpack.c.l.b16 %v69
    %v268 = vunpack.c.l.b16 %v70
    %v269 = vunpack.c.l.b16 %v71
    %v270 = vunpack.c.l.b16 %v72
    %v271 = vunpack.c.l.b16 %v73
    %v272 = vunpack.c.l.b16 %v74
    %v273 = vunpack.c.l.b16 %v75
    %v274 = vunpack.c.l.b16 %v76
    %v275 = vunpack.c.l.b16 %v77
    %v276 = vunpack.c.l.b16 %v78
    %v277 = vunpack.c.l.b16 %v79
    %v278 = vunpack.c.l.b16 %v80
    %v279 = vunpack.c.l.b16 %v81
    %v280 = vunpack.c.l.b16 %v82
    %v281 = vunpack.c.l.b16 %v83
    %v282 = vunpack.c.l.b16 %v84
    %v283 = vunpack.c.l.b16 %v85
    %v284 = vunpack.c.l.b16 %v86
    %v285 = vunpack.c.l.b16 %v87
    %v286 = vunpack.c.l.b16 %v88
    %v287 = vunpack.c.l.b16 %v89
    %v288 = vunpack.c.l.b16 %v90
    %v289 = vunpack.c.l.b16 %v91
    %v290 = vunpack.c.l.b16 %v92
    %v291 = vunpack.c.l.b16 %v93
    %v292 = vunpack.c.l.b16 %v94
    %v293 = vunpack.c.l.b16 %v95
    %v294 = vunpack.c.l.b16 %v96
    %v295 = vunpack.c.l.b16 %v97
    %v296 = vunpack.c.l.b16 %v98
    %v297 = vunpack.c.l.b16 %v99
    %v298 = vunpack.c.l.b16 %v100
    %v299 = vpack.c.b16 %v268, %v267
    %v300 = vpack.c.b16 %v270, %v269
    %v301 = vpack.c.b16 %v272, %v271
    %v302 = vpack.c.b16 %v274, %v273
    %v303 = vpack.c.b16 %v276, %v275
    %v304 = vpack.c.b16 %v278, %v277
    %v305 = vpack.c.b16 %v280, %v279
    %v306 = vpack.c.b16 %v282, %v281
    %v307 = vpack.c.b16 %v284, %v283
    %v308 = vpack.c.b16 %v286, %v285
    %v309 = vpack.c.b16 %v288, %v287
    %v310 = vpack.c.b16 %v290, %v289
    %v311 = vpack.c.b16 %v292, %v291
    %v312 = vpack.c.b16 %v294, %v293
    %v313 = vpack.c.b16 %v296, %v295
    %v314 = vpack.c.b16 %v298, %v297
    %331 = vmatprep.subr.bf16.mxu0 0
    %332 = vmatpush1.bf16.msra.mxu0 %v299
    %333 = vmatprep.subr.bf16.mxu0 0
    %334 = vmatpush1.bf16.msra.mxu0 %v300
    %335 = vmatprep.subr.bf16.mxu0 0
    %336 = vmatpush1.bf16.msra.mxu0 %v301
    %337 = vmatprep.subr.bf16.mxu0 0
    %338 = vmatpush1.bf16.msra.mxu0 %v302
    %339 = vmatprep.subr.bf16.mxu0 0
    %340 = vmatpush1.bf16.msra.mxu0 %v303
    %341 = vmatprep.subr.bf16.mxu0 0
    %342 = vmatpush1.bf16.msra.mxu0 %v304
    %343 = vmatprep.subr.bf16.mxu0 0
    %344 = vmatpush1.bf16.msra.mxu0 %v305
    %345 = vmatprep.subr.bf16.mxu0 0
    %346 = vmatpush1.bf16.msra.mxu0 %v306
    %347 = vmatprep.subr.bf16.mxu0 0
    %348 = vmatpush1.bf16.msra.mxu0 %v307
    %349 = vmatprep.subr.bf16.mxu0 0
    %350 = vmatpush1.bf16.msra.mxu0 %v308
    %351 = vmatprep.subr.bf16.mxu0 0
    %352 = vmatpush1.bf16.msra.mxu0 %v309
    %353 = vmatprep.subr.bf16.mxu0 0
    %354 = vmatpush1.bf16.msra.mxu0 %v310
    %355 = vmatprep.subr.bf16.mxu0 0
    %356 = vmatpush1.bf16.msra.mxu0 %v311
    %357 = vmatprep.subr.bf16.mxu0 0
    %358 = vmatpush1.bf16.msra.mxu0 %v312
    %359 = vmatprep.subr.bf16.mxu0 0
    %360 = vmatpush1.bf16.msra.mxu0 %v313
    %361 = vmatprep.subr.bf16.mxu0 0
    %362 = vmatpush1.bf16.msra.mxu0 %v314
    %363 = vmatprep.mubr.bf16.mxu0 %v184
    %364 = vmatmul.mubr.bf16.gmra.mrb[0].mxu0 %v183
    %v365 = vpop.f32.mrb[0].mxu0
    %v366 = vadd.f32 %v106, %v365
    %v367 = vpop.f32.mrb[0].mxu0
    %v368 = vpop.f32.mrb[0].mxu0
    %v369 = vadd.f32 %v106, %v368
    %v370 = vpop.f32.mrb[0].mxu0
    %371 = vmatprep.mubr.bf16.mxu0 %v186
    %372 = vmatmul.mubr.bf16.gmra.mrb[0].mxu0 %v185
    %v373 = vpop.f32.mrb[0].mxu0
    %v374 = vadd.f32 %v106, %v373
    %v375 = vpop.f32.mrb[0].mxu0
    %v376 = vpop.f32.mrb[0].mxu0
    %v377 = vadd.f32 %v106, %v376
    %v378 = vpop.f32.mrb[0].mxu0
    %379 = vmatprep.mubr.bf16.mxu0 %v188
    %380 = vmatmul.mubr.bf16.gmra.mrb[0].mxu0 %v187
    %v381 = vpop.f32.mrb[0].mxu0
    %v382 = vadd.f32 %v106, %v381
    %v383 = vpop.f32.mrb[0].mxu0
    %v384 = vpop.f32.mrb[0].mxu0
    %v385 = vadd.f32 %v106, %v384
    %v386 = vpop.f32.mrb[0].mxu0
    %387 = vmatprep.mubr.bf16.mxu0 %v190
    %388 = vmatmul.mubr.bf16.gmra.mrb[0].mxu0 %v189
    %v389 = vpop.f32.mrb[0].mxu0
    %v390 = vadd.f32 %v106, %v389
    %v391 = vpop.f32.mrb[0].mxu0
    %v392 = vpop.f32.mrb[0].mxu0
    %v393 = vadd.f32 %v106, %v392
    %v394 = vpop.f32.mrb[0].mxu0
    %395 = vmatprep.mubr.bf16.mxu0 %v192
    %396 = vmatmul.mubr.bf16.gmra.mrb[0].mxu0 %v191
    %v397 = vpop.f32.mrb[0].mxu0
    %v398 = vadd.f32 %v106, %v397
    %v399 = vpop.f32.mrb[0].mxu0
    %v400 = vpop.f32.mrb[0].mxu0
    %v401 = vadd.f32 %v106, %v400
    %v402 = vpop.f32.mrb[0].mxu0
    %403 = vmatprep.mubr.bf16.mxu0 %v194
    %404 = vmatmul.mubr.bf16.gmra.mrb[0].mxu0 %v193
    %v405 = vpop.f32.mrb[0].mxu0
    %v406 = vadd.f32 %v106, %v405
    %v407 = vpop.f32.mrb[0].mxu0
    %v408 = vpop.f32.mrb[0].mxu0
    %v409 = vadd.f32 %v106, %v408
    %v410 = vpop.f32.mrb[0].mxu0
    %411 = vmatprep.mubr.bf16.mxu0 %v196
    %412 = vmatmul.mubr.bf16.gmra.mrb[0].mxu0 %v195
    %v413 = vpop.f32.mrb[0].mxu0
    %v414 = vadd.f32 %v106, %v413
    %v415 = vpop.f32.mrb[0].mxu0
    %v416 = vpop.f32.mrb[0].mxu0
    %v417 = vadd.f32 %v106, %v416
    %v418 = vpop.f32.mrb[0].mxu0
    %419 = vmatprep.mubr.bf16.mxu0 %v198
    %420 = vmatmul.mubr.bf16.gmra.mrb[0].mxu0 %v197
    %v421 = vpop.f32.mrb[0].mxu0
    %v422 = vadd.f32 %v106, %v421
    %v423 = vpop.f32.mrb[0].mxu0
    %v424 = vpop.f32.mrb[0].mxu0
    %v425 = vadd.f32 %v106, %v424
    %v426 = vpop.f32.mrb[0].mxu0
    %427 = vmatprep.mubr.bf16.mxu0 %v200
    %428 = vmatmul.mubr.bf16.gmra.mrb[0].mxu0 %v199
    %v429 = vpop.f32.mrb[0].mxu0
    %v430 = vadd.f32 %v106, %v429
    %v431 = vpop.f32.mrb[0].mxu0
    %v432 = vpop.f32.mrb[0].mxu0
    %v433 = vadd.f32 %v106, %v432
    %v434 = vpop.f32.mrb[0].mxu0
    %435 = vmatprep.mubr.bf16.mxu0 %v202
    %436 = vmatmul.mubr.bf16.gmra.mrb[0].mxu0 %v201
    %v437 = vpop.f32.mrb[0].mxu0
    %v438 = vadd.f32 %v106, %v437
    %v439 = vpop.f32.mrb[0].mxu0
    %v440 = vpop.f32.mrb[0].mxu0
    %v441 = vadd.f32 %v106, %v440
    %v442 = vpop.f32.mrb[0].mxu0
    %443 = vmatprep.mubr.bf16.mxu0 %v204
    %444 = vmatmul.mubr.bf16.gmra.mrb[0].mxu0 %v203
    %v445 = vpop.f32.mrb[0].mxu0
    %v446 = vadd.f32 %v106, %v445
    %v447 = vpop.f32.mrb[0].mxu0
    %v448 = vpop.f32.mrb[0].mxu0
    %v449 = vadd.f32 %v106, %v448
    %v450 = vpop.f32.mrb[0].mxu0
    %451 = vmatprep.mubr.bf16.mxu0 %v206
    %452 = vmatmul.mubr.bf16.gmra.mrb[0].mxu0 %v205
    %v453 = vpop.f32.mrb[0].mxu0
    %v454 = vadd.f32 %v106, %v453
    %v455 = vpop.f32.mrb[0].mxu0
    %v456 = vpop.f32.mrb[0].mxu0
    %v457 = vadd.f32 %v106, %v456
    %v458 = vpop.f32.mrb[0].mxu0
    %459 = vmatprep.mubr.bf16.mxu0 %v208
    %460 = vmatmul.mubr.bf16.gmra.mrb[0].mxu0 %v207
    %v461 = vpop.f32.mrb[0].mxu0
    %v462 = vadd.f32 %v106, %v461
    %v463 = vpop.f32.mrb[0].mxu0
    %v464 = vpop.f32.mrb[0].mxu0
    %v465 = vpop.f32.mrb[0].mxu0
    %466 = vdwg.mxu0
    %v467 = vmax.f32 %v366, 0.0
    %v468 = vmax.f32 %v369, 0.0
    %v469 = vmax.f32 %v374, 0.0
    %v470 = vmax.f32 %v377, 0.0
    %v471 = vmax.f32 %v382, 0.0
    %v472 = vmax.f32 %v385, 0.0
    %v473 = vmax.f32 %v390, 0.0
    %v474 = vmax.f32 %v393, 0.0
    %v475 = vmax.f32 %v398, 0.0
    %v476 = vmax.f32 %v401, 0.0
    %v477 = vmax.f32 %v406, 0.0
    %v478 = vmax.f32 %v409, 0.0
    %v479 = vmax.f32 %v414, 0.0
    %v480 = vmax.f32 %v417, 0.0
    %v481 = vmax.f32 %v422, 0.0
    %v482 = vmax.f32 %v425, 0.0
    %v483 = vmax.f32 %v430, 0.0
    %v484 = vmax.f32 %v433, 0.0
    %v485 = vmax.f32 %v438, 0.0
    %v486 = vmax.f32 %v441, 0.0
    %v487 = vmax.f32 %v446, 0.0
    %v488 = vmax.f32 %v449, 0.0
    %v489 = vmax.f32 %v454, 0.0
    %v490 = vmax.f32 %v457, 0.0
    %v491 = vmax.f32 %v462, 0.0
    %492 = vst [vmem:[#allocation7] sm:$0xff] %v467
    %493 = vst [vmem:[#allocation7 + $0x8] sm:$0xff] %v468
    %494 = vst [vmem:[#allocation7 + $0x10] sm:$0xff] %v469
    %495 = vst [vmem:[#allocation7 + $0x18] sm:$0xff] %v470
    %496 = vst [vmem:[#allocation7 + $0x20] sm:$0xff] %v471
    %497 = vst [vmem:[#allocation7 + $0x28] sm:$0xff] %v472
    %498 = vst [vmem:[#allocation7 + $0x30] sm:$0xff] %v473
    %499 = vst [vmem:[#allocation7 + $0x38] sm:$0xff] %v474
    %500 = vst [vmem:[#allocation7 + $0x40] sm:$0xff] %v475
    %501 = vst [vmem:[#allocation7 + $0x48] sm:$0xff] %v476
    %502 = vst [vmem:[#allocation7 + $0x50] sm:$0xff] %v477
    %503 = vst [vmem:[#allocation7 + $0x58] sm:$0xff] %v478
    %504 = vst [vmem:[#allocation7 + $0x60] sm:$0xff] %v479
    %505 = vst [vmem:[#allocation7 + $0x68] sm:$0xff] %v480
    %506 = vst [vmem:[#allocation7 + $0x70] sm:$0xff] %v481
    %507 = vst [vmem:[#allocation7 + $0x78] sm:$0xff] %v482
    %508 = vst [vmem:[#allocation7 + $0x80] sm:$0xff] %v483
    %509 = vst [vmem:[#allocation7 + $0x88] sm:$0xff] %v484
    %510 = vst [vmem:[#allocation7 + $0x90] sm:$0xff] %v485
    %511 = vst [vmem:[#allocation7 + $0x98] sm:$0xff] %v486
    %512 = vst [vmem:[#allocation7 + $0xa0] sm:$0xff] %v487
    %513 = vst [vmem:[#allocation7 + $0xa8] sm:$0xff] %v488
    %514 = vst [vmem:[#allocation7 + $0xb0] sm:$0xff] %v489
    %515 = vst [vmem:[#allocation7 + $0xb8] sm:$0xff] %v490
    %516 = vst [vmem:[#allocation7 + $0xc0] sm:$0xff] %v491
    // Predicated region
    $region22: #{tpu_custom_call.1} parent=1 // pred_check
      _
    $region23: #{tpu_custom_call.1} parent=1 // pred_check_branch
      %518 = sbr.rel (0) target = $region25
    $region24: #{tpu_custom_call.1} parent=1 // pred_region
      %s520 = ssub.s32 3200, 3200
      %521 = vsyncadd [#allocation4], %s520
      %s522 = sshll.u32 [#allocation7], 4
      %s523 = int_to_ptr.vmem [resolvable:$true] %s522
      %528 = dma.vmem_to_hbm [thread:$0]  %s523, 3200, %s3, [#allocation4], 128, 128, 8
    $region25: #{tpu_custom_call.1} parent=1 // pred_fallthru
      _
    // Predicated region
    $region26: #{tpu_custom_call.1} parent=1 // pred_check
      _
    $region27: #{tpu_custom_call.1} parent=1 // pred_check_branch
      %530 = sbr.rel (0) target = $region29
    $region28: #{tpu_custom_call.1} parent=1 // pred_region
      %531 = dma.done [#allocation4], 3200
    $region29: #{tpu_custom_call.1} parent=1 // pred_fallthru
      _
    %532 = vsyncpa [#allocation3], 1
    %533 = vsyncpa [#allocation6], 1
    %534 = vsyncpa [#allocation4], 1

</llo_original>
